<compile_context>
chip_gen: v7x
topology: tpu7x:2x2x1
jax: 0.10.0
libtpu: 0.0.40
codegen_flags: <defaults>
</compile_context>

<pallas_src>
import functools

import jax
import jax.numpy as jnp
from jax import lax
from jax.experimental import pallas as pl
from jax.experimental.pallas import tpu as pltpu


def _gru_decoder_kernel(h0_ref, w_ref, b_ref, bin_ref, out_ref):
    """One batch-block of the GRU(zero-input) recurrence + fused fc + tanh.

    h0_ref  : (Bb, H)      initial hidden state (= latent_A), f32
    w_ref   : (H, 3H+O)    [W_hr^T | W_hz^T | W_hn^T | W_fc^T], bf16
    b_ref   : (1, 3H+O)    [b_ir+b_hr | b_iz+b_hz | b_hn | b_fc], f32
    bin_ref : (1, H)       b_in (applied outside r, per nn.GRU), f32
    out_ref : (Bb, T*O)    tanh(fc(h_t)), t = 1..T, lane-concatenated, f32
    """
    Bb, H = h0_ref.shape
    G = w_ref.shape[1]
    O = G - 3 * H
    T = out_ref.shape[1] // O

    w = w_ref[...]                                           # (H, 3H+O) bf16
    # Hoist bias broadcasts out of the time loop (JAX does not CSE broadcast_in_dim).
    b_all = jnp.broadcast_to(b_ref[...], (Bb, G))            # (Bb, 3H+O)
    b_in = jnp.broadcast_to(bin_ref[...], (Bb, H))           # (Bb, H)
    h = h0_ref[...]                                          # (Bb, H) f32

    def fused(h_cur):
        # Single-pass bf16 MXU matmul with f32 accumulation: one MXU push per step
        # on the serial recurrence chain (vs 3-6 passes under Precision.HIGHEST).
        return jnp.dot(h_cur.astype(jnp.bfloat16), w,
                       preferred_element_type=jnp.float32) + b_all

    fc_parts = []
    # T is small & static here (T=8) -> static unroll. For long sequences switch to
    # lax.fori_loop / a grid axis over T with h carried in VMEM scratch (mind the
    # 64 MiB physical VMEM on v7x).
    for t in range(T):
        g = fused(h)                                         # (Bb, 3H+O)
        if t > 0:
            # fc slice of g is W_fc @ h_t + b_fc == pre-tanh output of step t-1.
            fc_parts.append(g[:, 3 * H:])
        # nn.GRU equations with x_t = 0:
        #   r = sigmoid(W_hr h + b_ir + b_hr)
        #   z = sigmoid(W_hz h + b_iz + b_hz)
        #   n = tanh(b_in + r * (W_hn h + b_hn))
        #   h' = (1 - z) * n + z * h
        sg = jax.nn.sigmoid(g[:, :2 * H])                    # one EUP launch for r & z
        r, z = sg[:, :H], sg[:, H:]
        n = jnp.tanh(b_in + r * g[:, 2 * H:3 * H])
        h = (1.0 - z) * n + z * h

    # Output of the final timestep comes from the last hidden state.
    fc_parts.append(fused(h)[:, 3 * H:])

    # Lane-dense writeback: one tanh over all T outputs and one store, off the
    # recurrence critical path (instead of T masked (Bb,1,O) vst.msk stores).
    out_ref[...] = jnp.tanh(jnp.concatenate(fc_parts, axis=1)).astype(out_ref.dtype)


def pack_params(params):
    """One-time parameter packing (keep OUT of the per-call hot path).

      w_big : (H, 3H+O) bf16  [W_hr^T | W_hz^T | W_hn^T | W_fc^T]
      b_big : (1, 3H+O) f32   [b_ir+b_hr | b_iz+b_hz | b_hn | b_fc]
      b_in  : (1, H)    f32
    """
    w_hh = jnp.asarray(params["weight_hh"], jnp.float32)   # (3H, H), rows [r; z; n]
    b_ih = jnp.asarray(params["bias_ih"], jnp.float32)     # (3H,)
    b_hh = jnp.asarray(params["bias_hh"], jnp.float32)     # (3H,)
    w_fc = jnp.asarray(params["fc_weight"], jnp.float32)   # (O, H)
    b_fc = jnp.asarray(params["fc_bias"], jnp.float32)     # (O,)
    H = w_hh.shape[1]
    O = w_fc.shape[0]

    w_hr, w_hz, w_hn = w_hh[:H], w_hh[H:2 * H], w_hh[2 * H:]
    b_ir, b_iz, b_in = b_ih[:H], b_ih[H:2 * H], b_ih[2 * H:]
    b_hr, b_hz, b_hn = b_hh[:H], b_hh[H:2 * H], b_hh[2 * H:]

    w_big = jnp.concatenate([w_hr.T, w_hz.T, w_hn.T, w_fc.T], axis=1)   # (H, 3H+O)
    b_big = jnp.concatenate([b_ir + b_hr, b_iz + b_hz, b_hn, b_fc])     # (3H+O,)
    return {
        "w_big": w_big.astype(jnp.bfloat16),
        "b_big": b_big.reshape(1, 3 * H + O),
        "b_in": b_in.reshape(1, H),
    }


@functools.partial(jax.jit, static_argnames=("seq_length",))
def bond_vector_decoder(latent_A, packed, seq_length):
    """JAX wrapper reproducing BondVectorDecoder.forward.

    latent_A : (B, H) float32
    packed   : output of pack_params()
    returns  : (B, seq_length, O) float32 in (-1, 1)
    """
    B, H = latent_A.shape
    G = packed["w_big"].shape[1]
    O = G - 3 * H
    T = seq_length

    # Fill the sublane / MXU-M dimension: pad B to a multiple of 8 (f32 sublanes);
    # large batches are tiled into <=256-row blocks sharded "parallel" across cores.
    Bb = min(max(8, -(-B // 8) * 8), 256)
    Bp = -(-B // Bb) * Bb
    nblk = Bp // Bb
    h0 = jnp.zeros((Bp, H), jnp.float32).at[:B].set(latent_A.astype(jnp.float32))

    flops = 2 * (T + 1) * Bp * H * G
    transcendentals = Bp * (T * 3 * H + T * O)          # per-step sigmoid/tanh + out tanh
    bytes_accessed = (h0.size * 4 + packed["w_big"].size * 2
                      + packed["b_big"].size * 4 + packed["b_in"].size * 4
                      + Bp * T * O * 4)

    out_flat = pl.pallas_call(
        _gru_decoder_kernel,
        out_shape=jax.ShapeDtypeStruct((Bp, T * O), jnp.float32),
        grid=(nblk,),
        in_specs=[
            pl.BlockSpec((Bb, H), lambda i: (i, 0)),     # h0: per-block batch slice
            pl.BlockSpec((H, G), lambda i: (0, 0)),      # fused weights (shared)
            pl.BlockSpec((1, G), lambda i: (0, 0)),      # fused biases (shared)
            pl.BlockSpec((1, H), lambda i: (0, 0)),      # b_in (shared)
        ],
        out_specs=pl.BlockSpec((Bb, T * O), lambda i: (i, 0)),
        compiler_params=pltpu.CompilerParams(
            dimension_semantics=("parallel",)),
        cost_estimate=pl.CostEstimate(flops=flops,
                                      transcendentals=transcendentals,
                                      bytes_accessed=bytes_accessed),
    )(h0, packed["w_big"], packed["b_big"], packed["b_in"])

    return out_flat[:B].reshape(B, T, O)


def _reference(latent_A, params, seq_length):
    """Pure-JAX reference of the PyTorch forward, precision-matched to the kernel
    (bf16 matmul operands, f32 accumulation, f32 elementwise)."""
    H = latent_A.shape[1]
    w_hh = params["weight_hh"]
    b_ih, b_hh = params["bias_ih"], params["bias_hh"]
    w_fc, b_fc = params["fc_weight"], params["fc_bias"]
    w_hr, w_hz, w_hn = w_hh[:H], w_hh[H:2 * H], w_hh[2 * H:]
    b_ir, b_iz, b_in = b_ih[:H], b_ih[H:2 * H], b_ih[2 * H:]
    b_hr, b_hz, b_hn = b_hh[:H], b_hh[H:2 * H], b_hh[2 * H:]

    def hp(h, w_):
        return jnp.dot(h.astype(jnp.bfloat16), w_.T.astype(jnp.bfloat16),
                       preferred_element_type=jnp.float32)

    def step(h, _):
        r = jax.nn.sigmoid(b_ir + hp(h, w_hr) + b_hr)
        z = jax.nn.sigmoid(b_iz + hp(h, w_hz) + b_hz)
        n = jnp.tanh(b_in + r * (hp(h, w_hn) + b_hn))
        h_new = (1.0 - z) * n + z * h
        o = jnp.tanh(hp(h_new, w_fc) + b_fc)
        return h_new, o

    _, outs = lax.scan(step, latent_A, None, length=seq_length)   # (T, B, O)
    return jnp.transpose(outs, (1, 0, 2))                         # (B, T, O)


def init_params(key, latent_dim_A=32, output_size=3):
    """Deterministic synthetic parameters (PyTorch-style uniform init)."""
    H, O = latent_dim_A, output_size
    k = 1.0 / jnp.sqrt(jnp.float32(H))
    keys = jax.random.split(key, 6)
    u = lambda kk, shape: jax.random.uniform(kk, shape, jnp.float32, -k, k)
    return {
        # weight_ih (3H, input_size=O) exists in nn.GRU but multiplies zero inputs;
        # kept only for shape parity, never used.
        "weight_ih": u(keys[0], (3 * H, O)),
        "weight_hh": u(keys[1], (3 * H, H)),
        "bias_ih": u(keys[2], (3 * H,)),
        "bias_hh": u(keys[3], (3 * H,)),
        "fc_weight": u(keys[4], (O, H)),
        "fc_bias": u(keys[5], (O,)),
    }


if __name__ == "__main__":
    B, H, T, O = 2, 32, 8, 3   # batch, latent_dim_A (hidden), seq_length, output_size

    key = jax.random.PRNGKey(0)
    pkey, xkey = jax.random.split(key)
    params = init_params(pkey, latent_dim_A=H, output_size=O)
    packed = pack_params(params)                 # one-time packing, outside hot path
    latent_A = jax.random.normal(xkey, (B, H), jnp.float32)

    out = bond_vector_decoder(latent_A, packed, T)
    out = jax.block_until_ready(out)

    assert out.shape == (B, T, O), out.shape
    ref = _reference(latent_A, params, T)
    max_err = float(jnp.max(jnp.abs(out - ref)))
    # Both sides use bf16 matmul operands with f32 accumulation; remaining delta is
    # fused-vs-split dot accumulation order and bias-sum ordering over 8 steps.
    assert max_err < 2e-2, f"mismatch vs pure-JAX reference: {max_err}"

    print("KERNEL_OK")
</pallas_src>

<mosaic_0001>
module attributes {stable_mosaic.version = 11 : i64} {
  func.func @_gru_decoder_kernel(%arg0: i32, %arg1: memref<8x32xf32, #tpu.memory_space<vmem>>, %arg2: memref<32x99xbf16, #tpu.memory_space<vmem>>, %arg3: memref<1x99xf32, #tpu.memory_space<vmem>>, %arg4: memref<1x32xf32, #tpu.memory_space<vmem>>, %arg5: memref<8x24xf32, #tpu.memory_space<vmem>>) attributes {dimension_semantics = [#tpu.dimension_semantics<parallel>], iteration_bounds = array<i64: 1>, scalar_prefetch = 0 : i64, scratch_operands = 0 : i64, tpu.core_type = #tpu.core_type<tc>, window_params = [{transform_indices = @transform_0, window_bounds = array<i64: 8, 32>}, {pipeline_mode = #tpu.pipeline_mode<synchronous>, transform_indices = @transform_1, window_bounds = array<i64: 32, 99>}, {pipeline_mode = #tpu.pipeline_mode<synchronous>, transform_indices = @transform_2, window_bounds = array<i64: 1, 99>}, {pipeline_mode = #tpu.pipeline_mode<synchronous>, transform_indices = @transform_3, window_bounds = array<i64: 1, 32>}, {transform_indices = @transform_4, window_bounds = array<i64: 8, 24>}]} {
    %c0 = arith.constant 0 : index
    %c0_0 = arith.constant 0 : index
    %0 = vector.load %arg2[%c0, %c0_0] : memref<32x99xbf16, #tpu.memory_space<vmem>>, vector<32x99xbf16>
    %c0_1 = arith.constant 0 : index
    %c0_2 = arith.constant 0 : index
    %1 = vector.load %arg3[%c0_1, %c0_2] : memref<1x99xf32, #tpu.memory_space<vmem>>, vector<1x99xf32>
    %2 = vector.shape_cast %1 : vector<1x99xf32> to vector<1x99xf32>
    %3 = vector.broadcast %2 : vector<1x99xf32> to vector<8x99xf32>
    %c0_3 = arith.constant 0 : index
    %c0_4 = arith.constant 0 : index
    %4 = vector.load %arg4[%c0_3, %c0_4] : memref<1x32xf32, #tpu.memory_space<vmem>>, vector<1x32xf32>
    %5 = vector.shape_cast %4 : vector<1x32xf32> to vector<1x32xf32>
    %6 = vector.broadcast %5 : vector<1x32xf32> to vector<8x32xf32>
    %c0_5 = arith.constant 0 : index
    %c0_6 = arith.constant 0 : index
    %7 = vector.load %arg1[%c0_5, %c0_6] : memref<8x32xf32, #tpu.memory_space<vmem>>, vector<8x32xf32>
    %8 = arith.truncf %7 : vector<8x32xf32> to vector<8x32xbf16>
    %cst = arith.constant dense<0.000000e+00> : vector<8x99xf32>
    %9 = tpu.matmul %8, %0, %cst {dimension_numbers = #tpu.dot_dimension_numbers<[1], [0], [0], [1], [0, 0, 1, 1], [], []>} : vector<8x32xbf16>, vector<32x99xbf16>, vector<8x99xf32> -> vector<8x99xf32>
    %10 = arith.addf %9, %3 : vector<8x99xf32>
    %11 = vector.extract_strided_slice %10 {offsets = [0, 0], sizes = [8, 64], strides = [1, 1]} : vector<8x99xf32> to vector<8x64xf32>
    %12 = arith.negf %11 : vector<8x64xf32>
    %13 = math.exp %12 : vector<8x64xf32>
    %cst_7 = arith.constant 1.000000e+00 : f32
    %14 = vector.broadcast %cst_7 : f32 to vector<8x64xf32>
    %15 = arith.addf %14, %13 : vector<8x64xf32>
    %16 = arith.divf %14, %15 : vector<8x64xf32>
    %17 = vector.extract_strided_slice %16 {offsets = [0, 0], sizes = [8, 32], strides = [1, 1]} : vector<8x64xf32> to vector<8x32xf32>
    %18 = vector.extract_strided_slice %16 {offsets = [0, 32], sizes = [8, 32], strides = [1, 1]} : vector<8x64xf32> to vector<8x32xf32>
    %19 = vector.extract_strided_slice %10 {offsets = [0, 64], sizes = [8, 32], strides = [1, 1]} : vector<8x99xf32> to vector<8x32xf32>
    %20 = arith.mulf %17, %19 : vector<8x32xf32>
    %21 = arith.addf %6, %20 : vector<8x32xf32>
    %22 = math.tanh %21 : vector<8x32xf32>
    %cst_8 = arith.constant 1.000000e+00 : f32
    %23 = vector.broadcast %cst_8 : f32 to vector<8x32xf32>
    %24 = arith.subf %23, %18 : vector<8x32xf32>
    %25 = arith.mulf %24, %22 : vector<8x32xf32>
    %26 = arith.mulf %18, %7 : vector<8x32xf32>
    %27 = arith.addf %25, %26 : vector<8x32xf32>
    %28 = arith.truncf %27 : vector<8x32xf32> to vector<8x32xbf16>
    %cst_9 = arith.constant dense<0.000000e+00> : vector<8x99xf32>
    %29 = tpu.matmul %28, %0, %cst_9 {dimension_numbers = #tpu.dot_dimension_numbers<[1], [0], [0], [1], [0, 0, 1, 1], [], []>} : vector<8x32xbf16>, vector<32x99xbf16>, vector<8x99xf32> -> vector<8x99xf32>
    %30 = arith.addf %29, %3 : vector<8x99xf32>
    %31 = vector.extract_strided_slice %30 {offsets = [0, 96], sizes = [8, 3], strides = [1, 1]} : vector<8x99xf32> to vector<8x3xf32>
    %32 = vector.extract_strided_slice %30 {offsets = [0, 0], sizes = [8, 64], strides = [1, 1]} : vector<8x99xf32> to vector<8x64xf32>
    %33 = arith.negf %32 : vector<8x64xf32>
    %34 = math.exp %33 : vector<8x64xf32>
    %cst_10 = arith.constant 1.000000e+00 : f32
    %35 = vector.broadcast %cst_10 : f32 to vector<8x64xf32>
    %36 = arith.addf %35, %34 : vector<8x64xf32>
    %37 = arith.divf %35, %36 : vector<8x64xf32>
    %38 = vector.extract_strided_slice %37 {offsets = [0, 0], sizes = [8, 32], strides = [1, 1]} : vector<8x64xf32> to vector<8x32xf32>
    %39 = vector.extract_strided_slice %37 {offsets = [0, 32], sizes = [8, 32], strides = [1, 1]} : vector<8x64xf32> to vector<8x32xf32>
    %40 = vector.extract_strided_slice %30 {offsets = [0, 64], sizes = [8, 32], strides = [1, 1]} : vector<8x99xf32> to vector<8x32xf32>
    %41 = arith.mulf %38, %40 : vector<8x32xf32>
    %42 = arith.addf %6, %41 : vector<8x32xf32>
    %43 = math.tanh %42 : vector<8x32xf32>
    %cst_11 = arith.constant 1.000000e+00 : f32
    %44 = vector.broadcast %cst_11 : f32 to vector<8x32xf32>
    %45 = arith.subf %44, %39 : vector<8x32xf32>
    %46 = arith.mulf %45, %43 : vector<8x32xf32>
    %47 = arith.mulf %39, %27 : vector<8x32xf32>
    %48 = arith.addf %46, %47 : vector<8x32xf32>
    %49 = arith.truncf %48 : vector<8x32xf32> to vector<8x32xbf16>
    %cst_12 = arith.constant dense<0.000000e+00> : vector<8x99xf32>
    %50 = tpu.matmul %49, %0, %cst_12 {dimension_numbers = #tpu.dot_dimension_numbers<[1], [0], [0], [1], [0, 0, 1, 1], [], []>} : vector<8x32xbf16>, vector<32x99xbf16>, vector<8x99xf32> -> vector<8x99xf32>
    %51 = arith.addf %50, %3 : vector<8x99xf32>
    %52 = vector.extract_strided_slice %51 {offsets = [0, 96], sizes = [8, 3], strides = [1, 1]} : vector<8x99xf32> to vector<8x3xf32>
    %53 = vector.extract_strided_slice %51 {offsets = [0, 0], sizes = [8, 64], strides = [1, 1]} : vector<8x99xf32> to vector<8x64xf32>
    %54 = arith.negf %53 : vector<8x64xf32>
    %55 = math.exp %54 : vector<8x64xf32>
    %cst_13 = arith.constant 1.000000e+00 : f32
    %56 = vector.broadcast %cst_13 : f32 to vector<8x64xf32>
    %57 = arith.addf %56, %55 : vector<8x64xf32>
    %58 = arith.divf %56, %57 : vector<8x64xf32>
    %59 = vector.extract_strided_slice %58 {offsets = [0, 0], sizes = [8, 32], strides = [1, 1]} : vector<8x64xf32> to vector<8x32xf32>
    %60 = vector.extract_strided_slice %58 {offsets = [0, 32], sizes = [8, 32], strides = [1, 1]} : vector<8x64xf32> to vector<8x32xf32>
    %61 = vector.extract_strided_slice %51 {offsets = [0, 64], sizes = [8, 32], strides = [1, 1]} : vector<8x99xf32> to vector<8x32xf32>
    %62 = arith.mulf %59, %61 : vector<8x32xf32>
    %63 = arith.addf %6, %62 : vector<8x32xf32>
    %64 = math.tanh %63 : vector<8x32xf32>
    %cst_14 = arith.constant 1.000000e+00 : f32
    %65 = vector.broadcast %cst_14 : f32 to vector<8x32xf32>
    %66 = arith.subf %65, %60 : vector<8x32xf32>
    %67 = arith.mulf %66, %64 : vector<8x32xf32>
    %68 = arith.mulf %60, %48 : vector<8x32xf32>
    %69 = arith.addf %67, %68 : vector<8x32xf32>
    %70 = arith.truncf %69 : vector<8x32xf32> to vector<8x32xbf16>
    %cst_15 = arith.constant dense<0.000000e+00> : vector<8x99xf32>
    %71 = tpu.matmul %70, %0, %cst_15 {dimension_numbers = #tpu.dot_dimension_numbers<[1], [0], [0], [1], [0, 0, 1, 1], [], []>} : vector<8x32xbf16>, vector<32x99xbf16>, vector<8x99xf32> -> vector<8x99xf32>
    %72 = arith.addf %71, %3 : vector<8x99xf32>
    %73 = vector.extract_strided_slice %72 {offsets = [0, 96], sizes = [8, 3], strides = [1, 1]} : vector<8x99xf32> to vector<8x3xf32>
    %74 = vector.extract_strided_slice %72 {offsets = [0, 0], sizes = [8, 64], strides = [1, 1]} : vector<8x99xf32> to vector<8x64xf32>
    %75 = arith.negf %74 : vector<8x64xf32>
    %76 = math.exp %75 : vector<8x64xf32>
    %cst_16 = arith.constant 1.000000e+00 : f32
    %77 = vector.broadcast %cst_16 : f32 to vector<8x64xf32>
    %78 = arith.addf %77, %76 : vector<8x64xf32>
    %79 = arith.divf %77, %78 : vector<8x64xf32>
    %80 = vector.extract_strided_slice %79 {offsets = [0, 0], sizes = [8, 32], strides = [1, 1]} : vector<8x64xf32> to vector<8x32xf32>
    %81 = vector.extract_strided_slice %79 {offsets = [0, 32], sizes = [8, 32], strides = [1, 1]} : vector<8x64xf32> to vector<8x32xf32>
    %82 = vector.extract_strided_slice %72 {offsets = [0, 64], sizes = [8, 32], strides = [1, 1]} : vector<8x99xf32> to vector<8x32xf32>
    %83 = arith.mulf %80, %82 : vector<8x32xf32>
    %84 = arith.addf %6, %83 : vector<8x32xf32>
    %85 = math.tanh %84 : vector<8x32xf32>
    %cst_17 = arith.constant 1.000000e+00 : f32
    %86 = vector.broadcast %cst_17 : f32 to vector<8x32xf32>
    %87 = arith.subf %86, %81 : vector<8x32xf32>
    %88 = arith.mulf %87, %85 : vector<8x32xf32>
    %89 = arith.mulf %81, %69 : vector<8x32xf32>
    %90 = arith.addf %88, %89 : vector<8x32xf32>
    %91 = arith.truncf %90 : vector<8x32xf32> to vector<8x32xbf16>
    %cst_18 = arith.constant dense<0.000000e+00> : vector<8x99xf32>
    %92 = tpu.matmul %91, %0, %cst_18 {dimension_numbers = #tpu.dot_dimension_numbers<[1], [0], [0], [1], [0, 0, 1, 1], [], []>} : vector<8x32xbf16>, vector<32x99xbf16>, vector<8x99xf32> -> vector<8x99xf32>
    %93 = arith.addf %92, %3 : vector<8x99xf32>
    %94 = vector.extract_strided_slice %93 {offsets = [0, 96], sizes = [8, 3], strides = [1, 1]} : vector<8x99xf32> to vector<8x3xf32>
    %95 = vector.extract_strided_slice %93 {offsets = [0, 0], sizes = [8, 64], strides = [1, 1]} : vector<8x99xf32> to vector<8x64xf32>
    %96 = arith.negf %95 : vector<8x64xf32>
    %97 = math.exp %96 : vector<8x64xf32>
    %cst_19 = arith.constant 1.000000e+00 : f32
    %98 = vector.broadcast %cst_19 : f32 to vector<8x64xf32>
    %99 = arith.addf %98, %97 : vector<8x64xf32>
    %100 = arith.divf %98, %99 : vector<8x64xf32>
    %101 = vector.extract_strided_slice %100 {offsets = [0, 0], sizes = [8, 32], strides = [1, 1]} : vector<8x64xf32> to vector<8x32xf32>
    %102 = vector.extract_strided_slice %100 {offsets = [0, 32], sizes = [8, 32], strides = [1, 1]} : vector<8x64xf32> to vector<8x32xf32>
    %103 = vector.extract_strided_slice %93 {offsets = [0, 64], sizes = [8, 32], strides = [1, 1]} : vector<8x99xf32> to vector<8x32xf32>
    %104 = arith.mulf %101, %103 : vector<8x32xf32>
    %105 = arith.addf %6, %104 : vector<8x32xf32>
    %106 = math.tanh %105 : vector<8x32xf32>
    %cst_20 = arith.constant 1.000000e+00 : f32
    %107 = vector.broadcast %cst_20 : f32 to vector<8x32xf32>
    %108 = arith.subf %107, %102 : vector<8x32xf32>
    %109 = arith.mulf %108, %106 : vector<8x32xf32>
    %110 = arith.mulf %102, %90 : vector<8x32xf32>
    %111 = arith.addf %109, %110 : vector<8x32xf32>
    %112 = arith.truncf %111 : vector<8x32xf32> to vector<8x32xbf16>
    %cst_21 = arith.constant dense<0.000000e+00> : vector<8x99xf32>
    %113 = tpu.matmul %112, %0, %cst_21 {dimension_numbers = #tpu.dot_dimension_numbers<[1], [0], [0], [1], [0, 0, 1, 1], [], []>} : vector<8x32xbf16>, vector<32x99xbf16>, vector<8x99xf32> -> vector<8x99xf32>
    %114 = arith.addf %113, %3 : vector<8x99xf32>
    %115 = vector.extract_strided_slice %114 {offsets = [0, 96], sizes = [8, 3], strides = [1, 1]} : vector<8x99xf32> to vector<8x3xf32>
    %116 = vector.extract_strided_slice %114 {offsets = [0, 0], sizes = [8, 64], strides = [1, 1]} : vector<8x99xf32> to vector<8x64xf32>
    %117 = arith.negf %116 : vector<8x64xf32>
    %118 = math.exp %117 : vector<8x64xf32>
    %cst_22 = arith.constant 1.000000e+00 : f32
    %119 = vector.broadcast %cst_22 : f32 to vector<8x64xf32>
    %120 = arith.addf %119, %118 : vector<8x64xf32>
    %121 = arith.divf %119, %120 : vector<8x64xf32>
    %122 = vector.extract_strided_slice %121 {offsets = [0, 0], sizes = [8, 32], strides = [1, 1]} : vector<8x64xf32> to vector<8x32xf32>
    %123 = vector.extract_strided_slice %121 {offsets = [0, 32], sizes = [8, 32], strides = [1, 1]} : vector<8x64xf32> to vector<8x32xf32>
    %124 = vector.extract_strided_slice %114 {offsets = [0, 64], sizes = [8, 32], strides = [1, 1]} : vector<8x99xf32> to vector<8x32xf32>
    %125 = arith.mulf %122, %124 : vector<8x32xf32>
    %126 = arith.addf %6, %125 : vector<8x32xf32>
    %127 = math.tanh %126 : vector<8x32xf32>
    %cst_23 = arith.constant 1.000000e+00 : f32
    %128 = vector.broadcast %cst_23 : f32 to vector<8x32xf32>
    %129 = arith.subf %128, %123 : vector<8x32xf32>
    %130 = arith.mulf %129, %127 : vector<8x32xf32>
    %131 = arith.mulf %123, %111 : vector<8x32xf32>
    %132 = arith.addf %130, %131 : vector<8x32xf32>
    %133 = arith.truncf %132 : vector<8x32xf32> to vector<8x32xbf16>
    %cst_24 = arith.constant dense<0.000000e+00> : vector<8x99xf32>
    %134 = tpu.matmul %133, %0, %cst_24 {dimension_numbers = #tpu.dot_dimension_numbers<[1], [0], [0], [1], [0, 0, 1, 1], [], []>} : vector<8x32xbf16>, vector<32x99xbf16>, vector<8x99xf32> -> vector<8x99xf32>
    %135 = arith.addf %134, %3 : vector<8x99xf32>
    %136 = vector.extract_strided_slice %135 {offsets = [0, 96], sizes = [8, 3], strides = [1, 1]} : vector<8x99xf32> to vector<8x3xf32>
    %137 = vector.extract_strided_slice %135 {offsets = [0, 0], sizes = [8, 64], strides = [1, 1]} : vector<8x99xf32> to vector<8x64xf32>
    %138 = arith.negf %137 : vector<8x64xf32>
    %139 = math.exp %138 : vector<8x64xf32>
    %cst_25 = arith.constant 1.000000e+00 : f32
    %140 = vector.broadcast %cst_25 : f32 to vector<8x64xf32>
    %141 = arith.addf %140, %139 : vector<8x64xf32>
    %142 = arith.divf %140, %141 : vector<8x64xf32>
    %143 = vector.extract_strided_slice %142 {offsets = [0, 0], sizes = [8, 32], strides = [1, 1]} : vector<8x64xf32> to vector<8x32xf32>
    %144 = vector.extract_strided_slice %142 {offsets = [0, 32], sizes = [8, 32], strides = [1, 1]} : vector<8x64xf32> to vector<8x32xf32>
    %145 = vector.extract_strided_slice %135 {offsets = [0, 64], sizes = [8, 32], strides = [1, 1]} : vector<8x99xf32> to vector<8x32xf32>
    %146 = arith.mulf %143, %145 : vector<8x32xf32>
    %147 = arith.addf %6, %146 : vector<8x32xf32>
    %148 = math.tanh %147 : vector<8x32xf32>
    %cst_26 = arith.constant 1.000000e+00 : f32
    %149 = vector.broadcast %cst_26 : f32 to vector<8x32xf32>
    %150 = arith.subf %149, %144 : vector<8x32xf32>
    %151 = arith.mulf %150, %148 : vector<8x32xf32>
    %152 = arith.mulf %144, %132 : vector<8x32xf32>
    %153 = arith.addf %151, %152 : vector<8x32xf32>
    %154 = arith.truncf %153 : vector<8x32xf32> to vector<8x32xbf16>
    %cst_27 = arith.constant dense<0.000000e+00> : vector<8x99xf32>
    %155 = tpu.matmul %154, %0, %cst_27 {dimension_numbers = #tpu.dot_dimension_numbers<[1], [0], [0], [1], [0, 0, 1, 1], [], []>} : vector<8x32xbf16>, vector<32x99xbf16>, vector<8x99xf32> -> vector<8x99xf32>
    %156 = arith.addf %155, %3 : vector<8x99xf32>
    %157 = vector.extract_strided_slice %156 {offsets = [0, 96], sizes = [8, 3], strides = [1, 1]} : vector<8x99xf32> to vector<8x3xf32>
    %158 = vector.extract_strided_slice %156 {offsets = [0, 0], sizes = [8, 64], strides = [1, 1]} : vector<8x99xf32> to vector<8x64xf32>
    %159 = arith.negf %158 : vector<8x64xf32>
    %160 = math.exp %159 : vector<8x64xf32>
    %cst_28 = arith.constant 1.000000e+00 : f32
    %161 = vector.broadcast %cst_28 : f32 to vector<8x64xf32>
    %162 = arith.addf %161, %160 : vector<8x64xf32>
    %163 = arith.divf %161, %162 : vector<8x64xf32>
    %164 = vector.extract_strided_slice %163 {offsets = [0, 0], sizes = [8, 32], strides = [1, 1]} : vector<8x64xf32> to vector<8x32xf32>
    %165 = vector.extract_strided_slice %163 {offsets = [0, 32], sizes = [8, 32], strides = [1, 1]} : vector<8x64xf32> to vector<8x32xf32>
    %166 = vector.extract_strided_slice %156 {offsets = [0, 64], sizes = [8, 32], strides = [1, 1]} : vector<8x99xf32> to vector<8x32xf32>
    %167 = arith.mulf %164, %166 : vector<8x32xf32>
    %168 = arith.addf %6, %167 : vector<8x32xf32>
    %169 = math.tanh %168 : vector<8x32xf32>
    %cst_29 = arith.constant 1.000000e+00 : f32
    %170 = vector.broadcast %cst_29 : f32 to vector<8x32xf32>
    %171 = arith.subf %170, %165 : vector<8x32xf32>
    %172 = arith.mulf %171, %169 : vector<8x32xf32>
    %173 = arith.mulf %165, %153 : vector<8x32xf32>
    %174 = arith.addf %172, %173 : vector<8x32xf32>
    %175 = arith.truncf %174 : vector<8x32xf32> to vector<8x32xbf16>
    %cst_30 = arith.constant dense<0.000000e+00> : vector<8x99xf32>
    %176 = tpu.matmul %175, %0, %cst_30 {dimension_numbers = #tpu.dot_dimension_numbers<[1], [0], [0], [1], [0, 0, 1, 1], [], []>} : vector<8x32xbf16>, vector<32x99xbf16>, vector<8x99xf32> -> vector<8x99xf32>
    %177 = arith.addf %176, %3 : vector<8x99xf32>
    %178 = vector.extract_strided_slice %177 {offsets = [0, 96], sizes = [8, 3], strides = [1, 1]} : vector<8x99xf32> to vector<8x3xf32>
    %179 = tpu.concatenate %31, %52, %73, %94, %115, %136, %157, %178 in 1 : vector<8x3xf32>, vector<8x3xf32>, vector<8x3xf32>, vector<8x3xf32>, vector<8x3xf32>, vector<8x3xf32>, vector<8x3xf32>, vector<8x3xf32> -> vector<8x24xf32>
    %180 = math.tanh %179 : vector<8x24xf32>
    %c0_31 = arith.constant 0 : index
    %c0_32 = arith.constant 0 : index
    %181 = vector.load %arg5[%c0_31, %c0_32] : memref<8x24xf32, #tpu.memory_space<vmem>>, vector<8x24xf32>
    tpu.vector_store %arg5[%c0_31, %c0_32], %180 {strides = array<i32>} : memref<8x24xf32, #tpu.memory_space<vmem>>, vector<8x24xf32>,
    return
  }
  func.func @transform_0(%arg0: i32) -> (i32, i32) {
    %c0_i32 = arith.constant 0 : i32
    %c0_i32_0 = arith.constant 0 : i32
    return %arg0, %c0_i32 : i32, i32
  }
  func.func @transform_1(%arg0: i32) -> (i32, i32) {
    %c0_i32 = arith.constant 0 : i32
    %c0_i32_0 = arith.constant 0 : i32
    %c0_i32_1 = arith.constant 0 : i32
    return %c0_i32, %c0_i32_0 : i32, i32
  }
  func.func @transform_2(%arg0: i32) -> (i32, i32) {
    %c0_i32 = arith.constant 0 : i32
    %c0_i32_0 = arith.constant 0 : i32
    %c0_i32_1 = arith.constant 0 : i32
    return %c0_i32, %c0_i32_0 : i32, i32
  }
  func.func @transform_3(%arg0: i32) -> (i32, i32) {
    %c0_i32 = arith.constant 0 : i32
    %c0_i32_0 = arith.constant 0 : i32
    %c0_i32_1 = arith.constant 0 : i32
    return %c0_i32, %c0_i32_0 : i32, i32
  }
  func.func @transform_4(%arg0: i32) -> (i32, i32) {
    %c0_i32 = arith.constant 0 : i32
    %c0_i32_0 = arith.constant 0 : i32
    return %arg0, %c0_i32 : i32, i32
  }
}

</mosaic_0001>

<llo_original>
// kernel: bond_vector_decoder.1
$region0: #{bond_vector_decoder.1}
  #allocation0 [shape = 'u32[]', space=smem, size = 0x4, offset = 0x4, fixed_abs, tag = 'smem constant byte address 0x4 - core index']
  #allocation1 [shape = 'u32[144,128]{1,0:T(1,128)}', space=vmem, size = 0x12000, scoped, tag = 'internal scratch']
  %s0 = inlined_call_operand.vmem [shape: f32[8,32], index: 0, kind: input, shape index: {}]
  %s1 = inlined_call_operand.vmem [shape: bf16[32,99], index: 1, kind: input, shape index: {}]
  %s2 = inlined_call_operand.vmem [shape: f32[1,99], index: 2, kind: input, shape index: {}]
  %s3 = inlined_call_operand.vmem [shape: f32[1,32], index: 3, kind: input, shape index: {}]
  %s4 = inlined_call_operand.vmem [shape: f32[8,24], index: 4, kind: output, shape index: {}]
  %s5 = sld [smem:[#allocation0]]
  $region26: #{bond_vector_decoder.1} parent=0
    _
  %s7 = ssub.s32 1, %s5
  %s8 = scalar_select 0, %s7, %s5
  // Predicated region
  $region2: #{bond_vector_decoder.1} parent=0 // pred_check
    _
  $region3: #{bond_vector_decoder.1} parent=0 // pred_check_branch
    %10 = sbr.rel (0) target = $region5
  $region4: #{bond_vector_decoder.1} parent=0 // pred_region
    _
  $region5: #{bond_vector_decoder.1} parent=0 // pred_fallthru
    _
  // Predicated region
  $region6: #{bond_vector_decoder.1} parent=0 // pred_check
    _
  $region7: #{bond_vector_decoder.1} parent=0 // pred_check_branch
    %12 = sbr.rel (0) target = $region9
  $region8: #{bond_vector_decoder.1} parent=0 // pred_region
    _
  $region9: #{bond_vector_decoder.1} parent=0 // pred_fallthru
    _
  // Predicated region
  $region10: #{bond_vector_decoder.1} parent=0 // pred_check
    _
  $region11: #{bond_vector_decoder.1} parent=0 // pred_check_branch
    %14 = sbr.rel (0) target = $region13
  $region12: #{bond_vector_decoder.1} parent=0 // pred_region
    _
  $region13: #{bond_vector_decoder.1} parent=0 // pred_fallthru
    _
  // Predicated region
  $region14: #{bond_vector_decoder.1} parent=0 // pred_check
    _
  $region15: #{bond_vector_decoder.1} parent=0 // pred_check_branch
    %16 = sbr.rel (0) target = $region17
  $region16: #{bond_vector_decoder.1} parent=0 // pred_region
    _
  $region17: #{bond_vector_decoder.1} parent=0 // pred_fallthru
    _
  %v18 = vld [vmem:[%s1] sm:$0xf]
  %v19 = vld [vmem:[%s1 + $0x4] sm:$0xf]
  %v20 = vld [vmem:[%s1 + $0x8] sm:$0xf]
  %v21 = vld [vmem:[%s1 + $0xc] sm:$0xf]
  %v22 = vld [vmem:[%s2] sm:$0x1]
  %v24 = vlaneseq
  %v25 = vshrl.u32 %v24, 7
  %v26 = vsub.s32 0, %v25
  %v27 = vrot.slane %v22, %v26
  %v29 = vld [vmem:[%s3] sm:$0x1]
  %v31 = vlaneseq
  %v32 = vshrl.u32 %v31, 7
  %v33 = vsub.s32 0, %v32
  %v34 = vrot.slane %v29, %v33
  %v36 = vld [vmem:[%s0] sm:$0xff]
  %v37 = vpack.c.bf16 %v36, %v36
  %v42 = vunpack.c.l.b16 %v18
  %v43 = vunpack.c.l.b16 %v19
  %v44 = vunpack.c.l.b16 %v20
  %v45 = vunpack.c.l.b16 %v21
  %v46 = vpack.c.b16 %v43, %v42
  %v47 = vpack.c.b16 %v45, %v44
  %vm50 = vcmask 261120
  %v52 = vsel %vm50, %v37, 0
  %54 = vmatprep.subr.bf16.mxu0 0
  %55 = vmatpush1.bf16.msra.mxu0 %v46
  %56 = vmatprep.subr.bf16.mxu0 0
  %57 = vmatpush1.bf16.msra.mxu0 %v47
  %58 = vmatprep.subr.bf16.mxu0 0
  %59 = vmatpush1.bf16.msra.mxu0 0
  %60 = vmatprep.subr.bf16.mxu0 0
  %61 = vmatpush1.bf16.msra.mxu0 0
  %62 = vmatprep.subr.bf16.mxu0 0
  %63 = vmatpush1.bf16.msra.mxu0 0
  %64 = vmatprep.subr.bf16.mxu0 0
  %65 = vmatpush1.bf16.msra.mxu0 0
  %66 = vmatprep.subr.bf16.mxu0 0
  %67 = vmatpush1.bf16.msra.mxu0 0
  %68 = vmatprep.subr.bf16.mxu0 0
  %69 = vmatpush1.bf16.msra.mxu0 0
  %70 = vmatprep.subr.bf16.mxu0 0
  %71 = vmatpush1.bf16.msra.mxu0 0
  %72 = vmatprep.subr.bf16.mxu0 0
  %73 = vmatpush1.bf16.msra.mxu0 0
  %74 = vmatprep.subr.bf16.mxu0 0
  %75 = vmatpush1.bf16.msra.mxu0 0
  %76 = vmatprep.subr.bf16.mxu0 0
  %77 = vmatpush1.bf16.msra.mxu0 0
  %78 = vmatprep.subr.bf16.mxu0 0
  %79 = vmatpush1.bf16.msra.mxu0 0
  %80 = vmatprep.subr.bf16.mxu0 0
  %81 = vmatpush1.bf16.msra.mxu0 0
  %82 = vmatprep.subr.bf16.mxu0 0
  %83 = vmatpush1.bf16.msra.mxu0 0
  %84 = vmatprep.subr.bf16.mxu0 0
  %85 = vmatpush1.bf16.msra.mxu0 0
  %86 = vmatprep.mubr.bf16.mxu0 0
  %87 = vmatmul.mubr.bf16.gmra.mrb[0].mxu0 %v52
  %v88 = vpop.f32.mrb[0].mxu0
  %v89 = vadd.f32 %v27, %v88
  %v90 = vpop.f32.mrb[0].mxu0
  %v91 = vpop.f32.mrb[0].mxu0
  %v92 = vpop.f32.mrb[0].mxu0
  %93 = vdwg.mxu0
  %v94 = vxor.u32 %v89, 2147483648
  %v95 = vmul.f32 %v94, 1.442695
  %v96 = vpow.pop %v95
  %v97 = vadd.f32 %v96, 1.0
  %v98 = vrcp.pop %v97
  %v99 = vmul.f32 1.0, %v98
  %101 = vrot.lane.b32.xlu0 %v89, 64
  %v102 = vpop.permute.xlu0 %101
  %v104 = vmul.f32 %v99, %v102
  %v105 = vadd.f32 %v34, %v104
  %v106 = vtanh.pop %v105
  %v107 = vsub.f32 1.0, %v99
  %109 = vrot.lane.b32.xlu0 %v106, 32
  %v110 = vpop.permute.xlu0 %109
  %v112 = vmul.f32 %v107, %v110
  %114 = vrot.lane.b32.xlu0 %v36, 32
  %v115 = vpop.permute.xlu0 %114
  %v117 = vmul.f32 %v99, %v115
  %v118 = vadd.f32 %v112, %v117
  %v119 = vpack.c.bf16 %v118, %v118
  %121 = vrot.lane.b32.xlu0 %v119, 96
  %v122 = vpop.permute.xlu0 %121
  %v124 = vsel %vm50, %v122, 0
  %126 = vmatprep.subr.bf16.mxu0 0
  %127 = vmatpush1.bf16.msra.mxu0 %v46
  %128 = vmatprep.subr.bf16.mxu0 0
  %129 = vmatpush1.bf16.msra.mxu0 %v47
  %130 = vmatprep.subr.bf16.mxu0 0
  %131 = vmatpush1.bf16.msra.mxu0 0
  %132 = vmatprep.subr.bf16.mxu0 0
  %133 = vmatpush1.bf16.msra.mxu0 0
  %134 = vmatprep.subr.bf16.mxu0 0
  %135 = vmatpush1.bf16.msra.mxu0 0
  %136 = vmatprep.subr.bf16.mxu0 0
  %137 = vmatpush1.bf16.msra.mxu0 0
  %138 = vmatprep.subr.bf16.mxu0 0
  %139 = vmatpush1.bf16.msra.mxu0 0
  %140 = vmatprep.subr.bf16.mxu0 0
  %141 = vmatpush1.bf16.msra.mxu0 0
  %142 = vmatprep.subr.bf16.mxu0 0
  %143 = vmatpush1.bf16.msra.mxu0 0
  %144 = vmatprep.subr.bf16.mxu0 0
  %145 = vmatpush1.bf16.msra.mxu0 0
  %146 = vmatprep.subr.bf16.mxu0 0
  %147 = vmatpush1.bf16.msra.mxu0 0
  %148 = vmatprep.subr.bf16.mxu0 0
  %149 = vmatpush1.bf16.msra.mxu0 0
  %150 = vmatprep.subr.bf16.mxu0 0
  %151 = vmatpush1.bf16.msra.mxu0 0
  %152 = vmatprep.subr.bf16.mxu0 0
  %153 = vmatpush1.bf16.msra.mxu0 0
  %154 = vmatprep.subr.bf16.mxu0 0
  %155 = vmatpush1.bf16.msra.mxu0 0
  %156 = vmatprep.subr.bf16.mxu0 0
  %157 = vmatpush1.bf16.msra.mxu0 0
  %158 = vmatprep.mubr.bf16.mxu0 0
  %159 = vmatmul.mubr.bf16.gmra.mrb[0].mxu0 %v124
  %v160 = vpop.f32.mrb[0].mxu0
  %v161 = vadd.f32 %v27, %v160
  %v162 = vpop.f32.mrb[0].mxu0
  %v163 = vpop.f32.mrb[0].mxu0
  %v164 = vpop.f32.mrb[0].mxu0
  %165 = vdwg.mxu0
  %v166 = vxor.u32 %v161, 2147483648
  %v167 = vmul.f32 %v166, 1.442695
  %v168 = vpow.pop %v167
  %v169 = vadd.f32 %v168, 1.0
  %v170 = vrcp.pop %v169
  %v171 = vmul.f32 1.0, %v170
  %173 = vrot.lane.b32.xlu0 %v161, 64
  %v174 = vpop.permute.xlu0 %173
  %v176 = vmul.f32 %v171, %v174
  %v177 = vadd.f32 %v34, %v176
  %v178 = vtanh.pop %v177
  %v179 = vsub.f32 1.0, %v171
  %181 = vrot.lane.b32.xlu0 %v178, 32
  %v182 = vpop.permute.xlu0 %181
  %v184 = vmul.f32 %v179, %v182
  %v185 = vmul.f32 %v171, %v118
  %v186 = vadd.f32 %v184, %v185
  %v187 = vpack.c.bf16 %v186, %v186
  %189 = vrot.lane.b32.xlu0 %v187, 96
  %v190 = vpop.permute.xlu0 %189
  %v192 = vsel %vm50, %v190, 0
  %194 = vmatprep.subr.bf16.mxu0 0
  %195 = vmatpush1.bf16.msra.mxu0 %v46
  %196 = vmatprep.subr.bf16.mxu0 0
  %197 = vmatpush1.bf16.msra.mxu0 %v47
  %198 = vmatprep.subr.bf16.mxu0 0
  %199 = vmatpush1.bf16.msra.mxu0 0
  %200 = vmatprep.subr.bf16.mxu0 0
  %201 = vmatpush1.bf16.msra.mxu0 0
  %202 = vmatprep.subr.bf16.mxu0 0
  %203 = vmatpush1.bf16.msra.mxu0 0
  %204 = vmatprep.subr.bf16.mxu0 0
  %205 = vmatpush1.bf16.msra.mxu0 0
  %206 = vmatprep.subr.bf16.mxu0 0
  %207 = vmatpush1.bf16.msra.mxu0 0
  %208 = vmatprep.subr.bf16.mxu0 0
  %209 = vmatpush1.bf16.msra.mxu0 0
  %210 = vmatprep.subr.bf16.mxu0 0
  %211 = vmatpush1.bf16.msra.mxu0 0
  %212 = vmatprep.subr.bf16.mxu0 0
  %213 = vmatpush1.bf16.msra.mxu0 0
  %214 = vmatprep.subr.bf16.mxu0 0
  %215 = vmatpush1.bf16.msra.mxu0 0
  %216 = vmatprep.subr.bf16.mxu0 0
  %217 = vmatpush1.bf16.msra.mxu0 0
  %218 = vmatprep.subr.bf16.mxu0 0
  %219 = vmatpush1.bf16.msra.mxu0 0
  %220 = vmatprep.subr.bf16.mxu0 0
  %221 = vmatpush1.bf16.msra.mxu0 0
  %222 = vmatprep.subr.bf16.mxu0 0
  %223 = vmatpush1.bf16.msra.mxu0 0
  %224 = vmatprep.subr.bf16.mxu0 0
  %225 = vmatpush1.bf16.msra.mxu0 0
  %226 = vmatprep.mubr.bf16.mxu0 0
  %227 = vmatmul.mubr.bf16.gmra.mrb[0].mxu0 %v192
  %v228 = vpop.f32.mrb[0].mxu0
  %v229 = vadd.f32 %v27, %v228
  %v230 = vpop.f32.mrb[0].mxu0
  %v231 = vpop.f32.mrb[0].mxu0
  %v232 = vpop.f32.mrb[0].mxu0
  %233 = vdwg.mxu0
  %v234 = vxor.u32 %v229, 2147483648
  %v235 = vmul.f32 %v234, 1.442695
  %v236 = vpow.pop %v235
  %v237 = vadd.f32 %v236, 1.0
  %v238 = vrcp.pop %v237
  %v239 = vmul.f32 1.0, %v238
  %241 = vrot.lane.b32.xlu0 %v229, 64
  %v242 = vpop.permute.xlu0 %241
  %v244 = vmul.f32 %v239, %v242
  %v245 = vadd.f32 %v34, %v244
  %v246 = vtanh.pop %v245
  %v247 = vsub.f32 1.0, %v239
  %249 = vrot.lane.b32.xlu0 %v246, 32
  %v250 = vpop.permute.xlu0 %249
  %v252 = vmul.f32 %v247, %v250
  %v253 = vmul.f32 %v239, %v186
  %v254 = vadd.f32 %v252, %v253
  %v255 = vpack.c.bf16 %v254, %v254
  %257 = vrot.lane.b32.xlu0 %v255, 96
  %v258 = vpop.permute.xlu0 %257
  %v260 = vsel %vm50, %v258, 0
  %262 = vmatprep.subr.bf16.mxu0 0
  %263 = vmatpush1.bf16.msra.mxu0 %v46
  %264 = vmatprep.subr.bf16.mxu0 0
  %265 = vmatpush1.bf16.msra.mxu0 %v47
  %266 = vmatprep.subr.bf16.mxu0 0
  %267 = vmatpush1.bf16.msra.mxu0 0
  %268 = vmatprep.subr.bf16.mxu0 0
  %269 = vmatpush1.bf16.msra.mxu0 0
  %270 = vmatprep.subr.bf16.mxu0 0
  %271 = vmatpush1.bf16.msra.mxu0 0
  %272 = vmatprep.subr.bf16.mxu0 0
  %273 = vmatpush1.bf16.msra.mxu0 0
  %274 = vmatprep.subr.bf16.mxu0 0
  %275 = vmatpush1.bf16.msra.mxu0 0
  %276 = vmatprep.subr.bf16.mxu0 0
  %277 = vmatpush1.bf16.msra.mxu0 0
  %278 = vmatprep.subr.bf16.mxu0 0
  %279 = vmatpush1.bf16.msra.mxu0 0
  %280 = vmatprep.subr.bf16.mxu0 0
  %281 = vmatpush1.bf16.msra.mxu0 0
  %282 = vmatprep.subr.bf16.mxu0 0
  %283 = vmatpush1.bf16.msra.mxu0 0
  %284 = vmatprep.subr.bf16.mxu0 0
  %285 = vmatpush1.bf16.msra.mxu0 0
  %286 = vmatprep.subr.bf16.mxu0 0
  %287 = vmatpush1.bf16.msra.mxu0 0
  %288 = vmatprep.subr.bf16.mxu0 0
  %289 = vmatpush1.bf16.msra.mxu0 0
  %290 = vmatprep.subr.bf16.mxu0 0
  %291 = vmatpush1.bf16.msra.mxu0 0
  %292 = vmatprep.subr.bf16.mxu0 0
  %293 = vmatpush1.bf16.msra.mxu0 0
  %294 = vmatprep.mubr.bf16.mxu0 0
  %295 = vmatmul.mubr.bf16.gmra.mrb[0].mxu0 %v260
  %v296 = vpop.f32.mrb[0].mxu0
  %v297 = vadd.f32 %v27, %v296
  %v298 = vpop.f32.mrb[0].mxu0
  %v299 = vpop.f32.mrb[0].mxu0
  %v300 = vpop.f32.mrb[0].mxu0
  %301 = vdwg.mxu0
  %v302 = vxor.u32 %v297, 2147483648
  %v303 = vmul.f32 %v302, 1.442695
  %v304 = vpow.pop %v303
  %v305 = vadd.f32 %v304, 1.0
  %v306 = vrcp.pop %v305
  %v307 = vmul.f32 1.0, %v306
  %309 = vrot.lane.b32.xlu0 %v297, 64
  %v310 = vpop.permute.xlu0 %309
  %v312 = vmul.f32 %v307, %v310
  %v313 = vadd.f32 %v34, %v312
  %v314 = vtanh.pop %v313
  %v315 = vsub.f32 1.0, %v307
  %317 = vrot.lane.b32.xlu0 %v314, 32
  %v318 = vpop.permute.xlu0 %317
  %v320 = vmul.f32 %v315, %v318
  %v321 = vmul.f32 %v307, %v254
  %v322 = vadd.f32 %v320, %v321
  %v323 = vpack.c.bf16 %v322, %v322
  %325 = vrot.lane.b32.xlu0 %v323, 96
  %v326 = vpop.permute.xlu0 %325
  %v328 = vsel %vm50, %v326, 0
  %330 = vmatprep.subr.bf16.mxu0 0
  %331 = vmatpush1.bf16.msra.mxu0 %v46
  %332 = vmatprep.subr.bf16.mxu0 0
  %333 = vmatpush1.bf16.msra.mxu0 %v47
  %334 = vmatprep.subr.bf16.mxu0 0
  %335 = vmatpush1.bf16.msra.mxu0 0
  %336 = vmatprep.subr.bf16.mxu0 0
  %337 = vmatpush1.bf16.msra.mxu0 0
  %338 = vmatprep.subr.bf16.mxu0 0
  %339 = vmatpush1.bf16.msra.mxu0 0
  %340 = vmatprep.subr.bf16.mxu0 0
  %341 = vmatpush1.bf16.msra.mxu0 0
  %342 = vmatprep.subr.bf16.mxu0 0
  %343 = vmatpush1.bf16.msra.mxu0 0
  %344 = vmatprep.subr.bf16.mxu0 0
  %345 = vmatpush1.bf16.msra.mxu0 0
  %346 = vmatprep.subr.bf16.mxu0 0
  %347 = vmatpush1.bf16.msra.mxu0 0
  %348 = vmatprep.subr.bf16.mxu0 0
  %349 = vmatpush1.bf16.msra.mxu0 0
  %350 = vmatprep.subr.bf16.mxu0 0
  %351 = vmatpush1.bf16.msra.mxu0 0
  %352 = vmatprep.subr.bf16.mxu0 0
  %353 = vmatpush1.bf16.msra.mxu0 0
  %354 = vmatprep.subr.bf16.mxu0 0
  %355 = vmatpush1.bf16.msra.mxu0 0
  %356 = vmatprep.subr.bf16.mxu0 0
  %357 = vmatpush1.bf16.msra.mxu0 0
  %358 = vmatprep.subr.bf16.mxu0 0
  %359 = vmatpush1.bf16.msra.mxu0 0
  %360 = vmatprep.subr.bf16.mxu0 0
  %361 = vmatpush1.bf16.msra.mxu0 0
  %362 = vmatprep.mubr.bf16.mxu0 0
  %363 = vmatmul.mubr.bf16.gmra.mrb[0].mxu0 %v328
  %v364 = vpop.f32.mrb[0].mxu0
  %v365 = vadd.f32 %v27, %v364
  %v366 = vpop.f32.mrb[0].mxu0
  %v367 = vpop.f32.mrb[0].mxu0
  %v368 = vpop.f32.mrb[0].mxu0
  %369 = vdwg.mxu0
  %v370 = vxor.u32 %v365, 2147483648
  %v371 = vmul.f32 %v370, 1.442695
  %v372 = vpow.pop %v371
  %v373 = vadd.f32 %v372, 1.0
  %v374 = vrcp.pop %v373
  %v375 = vmul.f32 1.0, %v374
  %377 = vrot.lane.b32.xlu0 %v365, 64
  %v378 = vpop.permute.xlu0 %377
  %v380 = vmul.f32 %v375, %v378
  %v381 = vadd.f32 %v34, %v380
  %v382 = vtanh.pop %v381
  %v383 = vsub.f32 1.0, %v375
  %385 = vrot.lane.b32.xlu0 %v382, 32
  %v386 = vpop.permute.xlu0 %385
  %v388 = vmul.f32 %v383, %v386
  %v389 = vmul.f32 %v375, %v322
  %v390 = vadd.f32 %v388, %v389
  %v391 = vpack.c.bf16 %v390, %v390
  %393 = vrot.lane.b32.xlu0 %v391, 96
  %v394 = vpop.permute.xlu0 %393
  %v396 = vsel %vm50, %v394, 0
  %398 = vmatprep.subr.bf16.mxu0 0
  %399 = vmatpush1.bf16.msra.mxu0 %v46
  %400 = vmatprep.subr.bf16.mxu0 0
  %401 = vmatpush1.bf16.msra.mxu0 %v47
  %402 = vmatprep.subr.bf16.mxu0 0
  %403 = vmatpush1.bf16.msra.mxu0 0
  %404 = vmatprep.subr.bf16.mxu0 0
  %405 = vmatpush1.bf16.msra.mxu0 0
  %406 = vmatprep.subr.bf16.mxu0 0
  %407 = vmatpush1.bf16.msra.mxu0 0
  %408 = vmatprep.subr.bf16.mxu0 0
  %409 = vmatpush1.bf16.msra.mxu0 0
  %410 = vmatprep.subr.bf16.mxu0 0
  %411 = vmatpush1.bf16.msra.mxu0 0
  %412 = vmatprep.subr.bf16.mxu0 0
  %413 = vmatpush1.bf16.msra.mxu0 0
  %414 = vmatprep.subr.bf16.mxu0 0
  %415 = vmatpush1.bf16.msra.mxu0 0
  %416 = vmatprep.subr.bf16.mxu0 0
  %417 = vmatpush1.bf16.msra.mxu0 0
  %418 = vmatprep.subr.bf16.mxu0 0
  %419 = vmatpush1.bf16.msra.mxu0 0
  %420 = vmatprep.subr.bf16.mxu0 0
  %421 = vmatpush1.bf16.msra.mxu0 0
  %422 = vmatprep.subr.bf16.mxu0 0
  %423 = vmatpush1.bf16.msra.mxu0 0
  %424 = vmatprep.subr.bf16.mxu0 0
  %425 = vmatpush1.bf16.msra.mxu0 0
  %426 = vmatprep.subr.bf16.mxu0 0
  %427 = vmatpush1.bf16.msra.mxu0 0
  %428 = vmatprep.subr.bf16.mxu0 0
  %429 = vmatpush1.bf16.msra.mxu0 0
  %430 = vmatprep.mubr.bf16.mxu0 0
  %431 = vmatmul.mubr.bf16.gmra.mrb[0].mxu0 %v396
  %v432 = vpop.f32.mrb[0].mxu0
  %v433 = vadd.f32 %v27, %v432
  %v434 = vpop.f32.mrb[0].mxu0
  %v435 = vpop.f32.mrb[0].mxu0
  %v436 = vpop.f32.mrb[0].mxu0
  %437 = vdwg.mxu0
  %v438 = vxor.u32 %v433, 2147483648
  %v439 = vmul.f32 %v438, 1.442695
  %v440 = vpow.pop %v439
  %v441 = vadd.f32 %v440, 1.0
  %v442 = vrcp.pop %v441
  %v443 = vmul.f32 1.0, %v442
  %445 = vrot.lane.b32.xlu0 %v433, 64
  %v446 = vpop.permute.xlu0 %445
  %v448 = vmul.f32 %v443, %v446
  %v449 = vadd.f32 %v34, %v448
  %v450 = vtanh.pop %v449
  %v451 = vsub.f32 1.0, %v443
  %453 = vrot.lane.b32.xlu0 %v450, 32
  %v454 = vpop.permute.xlu0 %453
  %v456 = vmul.f32 %v451, %v454
  %v457 = vmul.f32 %v443, %v390
  %v458 = vadd.f32 %v456, %v457
  %v459 = vpack.c.bf16 %v458, %v458
  %461 = vrot.lane.b32.xlu0 %v459, 96
  %v462 = vpop.permute.xlu0 %461
  %v464 = vsel %vm50, %v462, 0
  %466 = vmatprep.subr.bf16.mxu0 0
  %467 = vmatpush1.bf16.msra.mxu0 %v46
  %468 = vmatprep.subr.bf16.mxu0 0
  %469 = vmatpush1.bf16.msra.mxu0 %v47
  %470 = vmatprep.subr.bf16.mxu0 0
  %471 = vmatpush1.bf16.msra.mxu0 0
  %472 = vmatprep.subr.bf16.mxu0 0
  %473 = vmatpush1.bf16.msra.mxu0 0
  %474 = vmatprep.subr.bf16.mxu0 0
  %475 = vmatpush1.bf16.msra.mxu0 0
  %476 = vmatprep.subr.bf16.mxu0 0
  %477 = vmatpush1.bf16.msra.mxu0 0
  %478 = vmatprep.subr.bf16.mxu0 0
  %479 = vmatpush1.bf16.msra.mxu0 0
  %480 = vmatprep.subr.bf16.mxu0 0
  %481 = vmatpush1.bf16.msra.mxu0 0
  %482 = vmatprep.subr.bf16.mxu0 0
  %483 = vmatpush1.bf16.msra.mxu0 0
  %484 = vmatprep.subr.bf16.mxu0 0
  %485 = vmatpush1.bf16.msra.mxu0 0
  %486 = vmatprep.subr.bf16.mxu0 0
  %487 = vmatpush1.bf16.msra.mxu0 0
  %488 = vmatprep.subr.bf16.mxu0 0
  %489 = vmatpush1.bf16.msra.mxu0 0
  %490 = vmatprep.subr.bf16.mxu0 0
  %491 = vmatpush1.bf16.msra.mxu0 0
  %492 = vmatprep.subr.bf16.mxu0 0
  %493 = vmatpush1.bf16.msra.mxu0 0
  %494 = vmatprep.subr.bf16.mxu0 0
  %495 = vmatpush1.bf16.msra.mxu0 0
  %496 = vmatprep.subr.bf16.mxu0 0
  %497 = vmatpush1.bf16.msra.mxu0 0
  %498 = vmatprep.mubr.bf16.mxu0 0
  %499 = vmatmul.mubr.bf16.gmra.mrb[0].mxu0 %v464
  %v500 = vpop.f32.mrb[0].mxu0
  %v501 = vadd.f32 %v27, %v500
  %v502 = vpop.f32.mrb[0].mxu0
  %v503 = vpop.f32.mrb[0].mxu0
  %v504 = vpop.f32.mrb[0].mxu0
  %505 = vdwg.mxu0
  %v506 = vxor.u32 %v501, 2147483648
  %v507 = vmul.f32 %v506, 1.442695
  %v508 = vpow.pop %v507
  %v509 = vadd.f32 %v508, 1.0
  %v510 = vrcp.pop %v509
  %v511 = vmul.f32 1.0, %v510
  %513 = vrot.lane.b32.xlu0 %v501, 64
  %v514 = vpop.permute.xlu0 %513
  %v516 = vmul.f32 %v511, %v514
  %v517 = vadd.f32 %v34, %v516
  %v518 = vtanh.pop %v517
  %v519 = vsub.f32 1.0, %v511
  %521 = vrot.lane.b32.xlu0 %v518, 32
  %v522 = vpop.permute.xlu0 %521
  %v524 = vmul.f32 %v519, %v522
  %v525 = vmul.f32 %v511, %v458
  %v526 = vadd.f32 %v524, %v525
  %v527 = vpack.c.bf16 %v526, %v526
  %529 = vrot.lane.b32.xlu0 %v527, 96
  %v530 = vpop.permute.xlu0 %529
  %v532 = vsel %vm50, %v530, 0
  %534 = vmatprep.subr.bf16.mxu0 0
  %535 = vmatpush1.bf16.msra.mxu0 %v46
  %536 = vmatprep.subr.bf16.mxu0 0
  %537 = vmatpush1.bf16.msra.mxu0 %v47
  %538 = vmatprep.subr.bf16.mxu0 0
  %539 = vmatpush1.bf16.msra.mxu0 0
  %540 = vmatprep.subr.bf16.mxu0 0
  %541 = vmatpush1.bf16.msra.mxu0 0
  %542 = vmatprep.subr.bf16.mxu0 0
  %543 = vmatpush1.bf16.msra.mxu0 0
  %544 = vmatprep.subr.bf16.mxu0 0
  %545 = vmatpush1.bf16.msra.mxu0 0
  %546 = vmatprep.subr.bf16.mxu0 0
  %547 = vmatpush1.bf16.msra.mxu0 0
  %548 = vmatprep.subr.bf16.mxu0 0
  %549 = vmatpush1.bf16.msra.mxu0 0
  %550 = vmatprep.subr.bf16.mxu0 0
  %551 = vmatpush1.bf16.msra.mxu0 0
  %552 = vmatprep.subr.bf16.mxu0 0
  %553 = vmatpush1.bf16.msra.mxu0 0
  %554 = vmatprep.subr.bf16.mxu0 0
  %555 = vmatpush1.bf16.msra.mxu0 0
  %556 = vmatprep.subr.bf16.mxu0 0
  %557 = vmatpush1.bf16.msra.mxu0 0
  %558 = vmatprep.subr.bf16.mxu0 0
  %559 = vmatpush1.bf16.msra.mxu0 0
  %560 = vmatprep.subr.bf16.mxu0 0
  %561 = vmatpush1.bf16.msra.mxu0 0
  %562 = vmatprep.subr.bf16.mxu0 0
  %563 = vmatpush1.bf16.msra.mxu0 0
  %564 = vmatprep.subr.bf16.mxu0 0
  %565 = vmatpush1.bf16.msra.mxu0 0
  %566 = vmatprep.mubr.bf16.mxu0 0
  %567 = vmatmul.mubr.bf16.gmra.mrb[0].mxu0 %v532
  %v568 = vpop.f32.mrb[0].mxu0
  %v569 = vadd.f32 %v27, %v568
  %v570 = vpop.f32.mrb[0].mxu0
  %v571 = vpop.f32.mrb[0].mxu0
  %v572 = vpop.f32.mrb[0].mxu0
  %573 = vdwg.mxu0
  %v574 = vxor.u32 %v569, 2147483648
  %v575 = vmul.f32 %v574, 1.442695
  %v576 = vpow.pop %v575
  %v577 = vadd.f32 %v576, 1.0
  %v578 = vrcp.pop %v577
  %v579 = vmul.f32 1.0, %v578
  %581 = vrot.lane.b32.xlu0 %v569, 64
  %v582 = vpop.permute.xlu0 %581
  %v584 = vmul.f32 %v579, %v582
  %v585 = vadd.f32 %v34, %v584
  %v586 = vtanh.pop %v585
  %v587 = vsub.f32 1.0, %v579
  %589 = vrot.lane.b32.xlu0 %v586, 32
  %v590 = vpop.permute.xlu0 %589
  %v592 = vmul.f32 %v587, %v590
  %v593 = vmul.f32 %v579, %v526
  %v594 = vadd.f32 %v592, %v593
  %v595 = vpack.c.bf16 %v594, %v594
  %597 = vrot.lane.b32.xlu0 %v595, 96
  %v598 = vpop.permute.xlu0 %597
  %v600 = vsel %vm50, %v598, 0
  %602 = vmatprep.subr.bf16.mxu0 0
  %603 = vmatpush1.bf16.msra.mxu0 %v46
  %604 = vmatprep.subr.bf16.mxu0 0
  %605 = vmatpush1.bf16.msra.mxu0 %v47
  %606 = vmatprep.subr.bf16.mxu0 0
  %607 = vmatpush1.bf16.msra.mxu0 0
  %608 = vmatprep.subr.bf16.mxu0 0
  %609 = vmatpush1.bf16.msra.mxu0 0
  %610 = vmatprep.subr.bf16.mxu0 0
  %611 = vmatpush1.bf16.msra.mxu0 0
  %612 = vmatprep.subr.bf16.mxu0 0
  %613 = vmatpush1.bf16.msra.mxu0 0
  %614 = vmatprep.subr.bf16.mxu0 0
  %615 = vmatpush1.bf16.msra.mxu0 0
  %616 = vmatprep.subr.bf16.mxu0 0
  %617 = vmatpush1.bf16.msra.mxu0 0
  %618 = vmatprep.subr.bf16.mxu0 0
  %619 = vmatpush1.bf16.msra.mxu0 0
  %620 = vmatprep.subr.bf16.mxu0 0
  %621 = vmatpush1.bf16.msra.mxu0 0
  %622 = vmatprep.subr.bf16.mxu0 0
  %623 = vmatpush1.bf16.msra.mxu0 0
  %624 = vmatprep.subr.bf16.mxu0 0
  %625 = vmatpush1.bf16.msra.mxu0 0
  %626 = vmatprep.subr.bf16.mxu0 0
  %627 = vmatpush1.bf16.msra.mxu0 0
  %628 = vmatprep.subr.bf16.mxu0 0
  %629 = vmatpush1.bf16.msra.mxu0 0
  %630 = vmatprep.subr.bf16.mxu0 0
  %631 = vmatpush1.bf16.msra.mxu0 0
  %632 = vmatprep.subr.bf16.mxu0 0
  %633 = vmatpush1.bf16.msra.mxu0 0
  %634 = vmatprep.mubr.bf16.mxu0 0
  %635 = vmatmul.mubr.bf16.gmra.mrb[0].mxu0 %v600
  %v636 = vpop.f32.mrb[0].mxu0
  %v637 = vadd.f32 %v27, %v636
  %v638 = vpop.f32.mrb[0].mxu0
  %v639 = vpop.f32.mrb[0].mxu0
  %v640 = vpop.f32.mrb[0].mxu0
  %641 = vdwg.mxu0
  %642 = vrot.lane.b32.xlu0 %v161, 32
  %v643 = vpop.permute.xlu0 %642
  %645 = vrot.lane.b32.xlu0 %v229, 35
  %v646 = vpop.permute.xlu0 %645
  %648 = vrot.lane.b32.xlu0 %v297, 38
  %v649 = vpop.permute.xlu0 %648
  %651 = vrot.lane.b32.xlu0 %v365, 41
  %v652 = vpop.permute.xlu0 %651
  %654 = vrot.lane.b32.xlu0 %v433, 44
  %v655 = vpop.permute.xlu0 %654
  %657 = vrot.lane.b32.xlu0 %v501, 47
  %v658 = vpop.permute.xlu0 %657
  %660 = vrot.lane.b32.xlu0 %v569, 50
  %v661 = vpop.permute.xlu0 %660
  %664 = vrot.lane.b32.xlu0 %v637, 53
  %v665 = vpop.permute.xlu0 %664
  %vm667 = vcmask 23552
  %v668 = vsel %vm667, %v643, %v646
  %vm669 = vcmask 48128
  %v670 = vsel %vm669, %v668, %v649
  %vm671 = vcmask 72704
  %v672 = vsel %vm671, %v670, %v652
  %vm673 = vcmask 97280
  %v674 = vsel %vm673, %v672, %v655
  %vm675 = vcmask 121856
  %v676 = vsel %vm675, %v674, %v658
  %vm677 = vcmask 146432
  %v678 = vsel %vm677, %v676, %v661
  %vm679 = vcmask 171008
  %v680 = vsel %vm679, %v678, %v665
  %v681 = vtanh.pop %v680
  %vm682 = vcmask 195584
  %683 = vst.msk [vmem:[%s4] sm:$0xff] %vm682, %v681
  // Predicated region
  $region18: #{bond_vector_decoder.1} parent=0 // pred_check
    _
  $region19: #{bond_vector_decoder.1} parent=0 // pred_check_branch
    %685 = sbr.rel (0) target = $region21
  $region20: #{bond_vector_decoder.1} parent=0 // pred_region
    _
  $region21: #{bond_vector_decoder.1} parent=0 // pred_fallthru
    _
  // Predicated region
  $region22: #{bond_vector_decoder.1} parent=0 // pred_check
    _
  $region23: #{bond_vector_decoder.1} parent=0 // pred_check_branch
    %687 = sbr.rel (0) target = $region25
  $region24: #{bond_vector_decoder.1} parent=0 // pred_region
    _
  $region25: #{bond_vector_decoder.1} parent=0 // pred_fallthru
    _

</llo_original>
